<compile_context>
chip_gen: v5e
topology: v5e:2x2
jax: 0.10.0
libtpu: 0.0.40
codegen_flags: <defaults>
</compile_context>

<pallas_src>
import functools

import jax
import jax.numpy as jnp
from jax import lax
from jax.experimental import pallas as pl
from jax.experimental.pallas import tpu as pltpu


_EXP_CLAMP = 80.0  # keep exp() finite so a saturated chunk never yields inf * 0


def _log_g(u):
    # log(g(u)) with a single log:
    #   u >= 0 : log(u + 0.5)
    #   u <  0 : log(sigmoid(u)) == -softplus(-u)
    return jnp.log(jnp.where(u >= 0.0, u + 0.5, jax.nn.sigmoid(u)))


def _prefix_sum_rows(x, rows):
    """Inclusive prefix sum along axis 0 via log2(n) masked roll+add steps.

    Uses pltpu.roll (jnp.roll semantics: out[i] = in[i - shift]) so the work
    lands on XLU/VPU slots instead of tiny, badly-utilised MXU matmuls.
    """
    n = x.shape[0]
    s = 1
    while s < n:
        shifted = pltpu.roll(x, s, axis=0)
        x = x + jnp.where(rows >= s, shifted, 0.0)
        s *= 2
    return x


def _mingru_kernel(x_ref, logh0_ref, w_ref, b_ref, out_ref,
                   a_ref, m_ref, s_ref, lc_ref, lv_ref, *, ct):
    # x_ref: (TT, D), logh0_ref: (1, TH), w_ref: (D, 2TH), b_ref: (1, 2TH),
    # out_ref: (TT, TH); a/m/s_ref: (1, TH) carries, lc/lv_ref: (TT, TH) staging.
    tt, th = out_ref.shape

    # Reset the scan carry at the start of every (batch, hidden-tile) time loop.
    @pl.when(pl.program_id(2) == 0)
    def _init():
        a_ref[...] = jnp.zeros((1, th), jnp.float32)
        m_ref[...] = logh0_ref[...]                 # v_0 = log_g(h0) - a_0, a_0 = 0
        s_ref[...] = jnp.ones((1, th), jnp.float32)

    # Fused projections on the MXU: (TT, D) @ (D, 2*TH) -> (TT, 2*TH), f32 acc.
    kk = jnp.dot(x_ref[...], w_ref[...],
                 preferred_element_type=jnp.float32) + b_ref[...]
    k = kk[:, :th]                                  # linear_z(x)   (lane-aligned split)
    hh = kk[:, th:]                                 # linear_h(x)

    lc = -jax.nn.softplus(k)                        # log(1 - sigmoid(k))
    # log(sigmoid(k)) = -softplus(-k) = k - softplus(k) = k + lc  (no 2nd softplus)
    lv = k + lc + _log_g(hh)
    lc_ref[...] = lc
    lv_ref[...] = lv

    rows = lax.broadcasted_iota(jnp.int32, (ct, th), 0)   # hoisted out of the loop

    def scan_chunk(c, carry):
        a, m, s = carry                                    # each (1, TH) f32
        i = pl.multiple_of(c * ct, ct)
        lc_c = lc_ref[pl.ds(i, ct), :]                     # (CT, TH)
        lv_c = lv_ref[pl.ds(i, ct), :]

        a_star = a + _prefix_sum_rows(lc_c, rows)          # running cumsum(log coeffs)
        v = lv_c - a_star
        m_new = jnp.maximum(m, jnp.max(v, axis=0, keepdims=True))
        e = jnp.exp(v - m_new)
        s_all = s * jnp.exp(m - m_new) + _prefix_sum_rows(e, rows)

        # h_t = exp(a_star + logcumsumexp) = exp(a_star + m_new) * s_all.
        expo = jnp.minimum(a_star + m_new, _EXP_CLAMP)
        h_c = jnp.exp(expo) * s_all
        out_ref[pl.ds(i, ct), :] = h_c.astype(out_ref.dtype)

        return (a_star[ct - 1:ct, :], m_new, s_all[ct - 1:ct, :])

    a, m, s = lax.fori_loop(0, tt // ct, scan_chunk,
                            (a_ref[...], m_ref[...], s_ref[...]))
    a_ref[...] = a
    m_ref[...] = m
    s_ref[...] = s


def _round_up(n, m):
    return ((n + m - 1) // m) * m


def _vmem_capacity_bytes():
    try:
        cap = int(getattr(pltpu.get_tpu_info(), "vmem_capacity_bytes"))
        if cap > 0:
            return cap
    except Exception:
        pass
    return 64 * 1024 * 1024      # conservative (v7x-sized) fallback


def _tile_bytes(tt, d, th, in_bytes):
    # Per-grid-step VMEM footprint (double-buffered pipeline tiles + scratch).
    x_t = 2 * tt * d * in_bytes
    w_t = 2 * d * (2 * th) * in_bytes
    o_t = 2 * tt * th * in_bytes
    small = 2 * (2 * th) * 4 + 2 * th * 4
    scratch = 2 * tt * th * 4 + 3 * th * 4
    return x_t + w_t + o_t + small + scratch


def _choose_tiles(t, d, h_pad, in_bytes):
    cap = _vmem_capacity_bytes()
    budget = int(cap * 0.45)

    th = 128
    if h_pad % 256 == 0 and 2 * d * (2 * 256) * in_bytes <= budget // 3:
        th = 256

    t8 = _round_up(t, 8)
    if t8 <= 512 and _tile_bytes(t8, d, th, in_bytes) <= budget:
        tt = t8
    else:
        tt = 8
        for cand in (512, 256, 128, 64, 32, 16):
            if _tile_bytes(cand, d, th, in_bytes) <= budget:
                tt = cand
                break
    t_pad = _round_up(t8, tt)
    vmem_limit = int(min(cap * 3 // 4,
                         max(32 * 1024 * 1024, 2 * _tile_bytes(tt, d, th, in_bytes))))
    return tt, t_pad, th, vmem_limit


@jax.jit
def mingru_forward_parallel(x, h0, wz, bz, wh, bh):
    """MinGRU.forward_parallel: returns (out, out_last)."""
    B, T, D = x.shape
    H = wz.shape[0]
    out_dtype = x.dtype
    in_bytes = jnp.dtype(out_dtype).itemsize

    H_pad = _round_up(H, 128)
    TT, T_pad, TH, vmem_limit = _choose_tiles(T, D, H_pad, in_bytes)
    NH = H_pad // TH
    NT = T_pad // TT
    CT = 8

    # Pad time / hidden dims so every tile is (8, 128)-aligned (unmasked stores);
    # padding is sliced off at the end.
    x_p = jnp.pad(x, ((0, 0), (0, T_pad - T), (0, 0)))
    h0_p = jnp.pad(h0, ((0, 0), (0, 0), (0, H_pad - H)))
    log_h0 = _log_g(h0_p.astype(jnp.float32))           # hoisted out of the kernel

    # Per-H-tile fused weights: w_packed[h] = [Wz^T | Wh^T] restricted to tile h.
    wzT = jnp.pad(wz.T, ((0, 0), (0, H_pad - H)))        # (D, H_pad)
    whT = jnp.pad(wh.T, ((0, 0), (0, H_pad - H)))
    wz_t = wzT.reshape(D, NH, TH).transpose(1, 0, 2)     # (NH, D, TH)
    wh_t = whT.reshape(D, NH, TH).transpose(1, 0, 2)
    w_packed = jnp.concatenate([wz_t, wh_t], axis=2).astype(out_dtype)   # (NH, D, 2TH)

    bz_p = jnp.pad(bz, (0, H_pad - H)).astype(jnp.float32)
    bh_p = jnp.pad(bh, (0, H_pad - H)).astype(jnp.float32)
    b_packed = jnp.concatenate([bz_p.reshape(NH, 1, TH),
                                bh_p.reshape(NH, 1, TH)], axis=2)        # (NH, 1, 2TH)

    kernel = functools.partial(_mingru_kernel, ct=CT)

    out = pl.pallas_call(
        kernel,
        out_shape=jax.ShapeDtypeStruct((B, T_pad, H_pad), out_dtype),
        grid_spec=pltpu.PrefetchScalarGridSpec(
            num_scalar_prefetch=0,
            grid=(B, NH, NT),
            in_specs=[
                pl.BlockSpec((None, TT, D), lambda b, h, t: (b, t, 0)),       # x chunk
                pl.BlockSpec((None, 1, TH), lambda b, h, t: (b, 0, h)),       # log_g(h0)
                pl.BlockSpec((None, D, 2 * TH), lambda b, h, t: (h, 0, 0)),   # [Wz|Wh]^T
                pl.BlockSpec((None, 1, 2 * TH), lambda b, h, t: (h, 0, 0)),   # [bz|bh]
            ],
            out_specs=pl.BlockSpec((None, TT, TH), lambda b, h, t: (b, t, h)),
            scratch_shapes=[
                pltpu.VMEM((1, TH), jnp.float32),    # a_star carry
                pltpu.VMEM((1, TH), jnp.float32),    # running max carry
                pltpu.VMEM((1, TH), jnp.float32),    # running sum carry
                pltpu.VMEM((TT, TH), jnp.float32),   # staged log-coeffs
                pltpu.VMEM((TT, TH), jnp.float32),   # staged log-values
            ],
        ),
        compiler_params=pltpu.CompilerParams(
            dimension_semantics=("parallel", "parallel", "arbitrary"),
            vmem_limit_bytes=vmem_limit,
        ),
    )(x_p, log_h0, w_packed, b_packed)

    out = out[:, :T, :H]
    return out, out[:, -1:]


def _log_g_ref(x):
    # torch: where(x >= 0, log(relu(x) + 0.5), -softplus(-x))
    return jnp.where(x >= 0.0,
                     jnp.log(jnp.maximum(x, 0.0) + 0.5),
                     -jax.nn.softplus(-x))


def mingru_reference(x, h0, wz, bz, wh, bh):
    """Pure-JAX mirror of the PyTorch forward_parallel (f32-exact matmuls)."""
    hp = lax.Precision.HIGHEST
    k = jnp.einsum("btd,hd->bth", x, wz, precision=hp) + bz
    hh = jnp.einsum("btd,hd->bth", x, wh, precision=hp) + bh
    log_z = -jax.nn.softplus(-k)
    log_coeffs = -jax.nn.softplus(k)
    lc_full = jnp.concatenate([jnp.zeros_like(h0), log_coeffs], axis=1)
    lv_full = jnp.concatenate([_log_g_ref(h0), log_z + _log_g_ref(hh)], axis=1)
    a_star = jnp.cumsum(lc_full, axis=1)
    log_h = a_star + lax.cumlogsumexp(lv_full - a_star, axis=1)
    h = jnp.exp(log_h)
    out = h[:, 1:]
    return out, out[:, -1:]


if __name__ == "__main__":
    B, T, D, H = 2, 8, 16, 32   # batch, seq, input_size, hidden_size

    key = jax.random.PRNGKey(0)
    kx, kh0, kwz, kbz, kwh, kbh = jax.random.split(key, 6)

    x = jax.random.normal(kx, (B, T, D), dtype=jnp.float32)
    h0 = jax.random.normal(kh0, (B, 1, H), dtype=jnp.float32)

    # nn.Linear default init range (deterministic draws here).
    bound = 1.0 / (D ** 0.5)
    wz = jax.random.uniform(kwz, (H, D), jnp.float32, -bound, bound)
    bz = jax.random.uniform(kbz, (H,), jnp.float32, -bound, bound)
    wh = jax.random.uniform(kwh, (H, D), jnp.float32, -bound, bound)
    bh = jax.random.uniform(kbh, (H,), jnp.float32, -bound, bound)

    out, last = mingru_forward_parallel(x, h0, wz, bz, wh, bh)
    out = jax.block_until_ready(out)
    last = jax.block_until_ready(last)

    ref_out, ref_last = mingru_reference(x, h0, wz, bz, wh, bh)
    assert out.shape == (B, T, H) and last.shape == (B, 1, H)
    assert jnp.allclose(out, ref_out, rtol=5e-4, atol=5e-4), \
        float(jnp.max(jnp.abs(out - ref_out)))
    assert jnp.allclose(last, ref_last, rtol=5e-4, atol=5e-4)

    print("KERNEL_OK")
</pallas_src>

<mosaic_0001>
module attributes {stable_mosaic.version = 11 : i64} {
  func.func @_mingru_kernel(%arg0: i32, %arg1: i32, %arg2: i32, %arg3: memref<1x8x16xf32, #tpu.memory_space<vmem>>, %arg4: memref<1x1x128xf32, #tpu.memory_space<vmem>>, %arg5: memref<1x16x256xf32, #tpu.memory_space<vmem>>, %arg6: memref<1x1x256xf32, #tpu.memory_space<vmem>>, %arg7: memref<1x8x128xf32, #tpu.memory_space<vmem>>, %arg8: memref<1x128xf32, #tpu.memory_space<vmem>>, %arg9: memref<1x128xf32, #tpu.memory_space<vmem>>, %arg10: memref<1x128xf32, #tpu.memory_space<vmem>>, %arg11: memref<8x128xf32, #tpu.memory_space<vmem>>, %arg12: memref<8x128xf32, #tpu.memory_space<vmem>>) attributes {dimension_semantics = [#tpu.dimension_semantics<parallel>, #tpu.dimension_semantics<parallel>, #tpu.dimension_semantics<arbitrary>], iteration_bounds = array<i64: 2, 1, 1>, scalar_prefetch = 0 : i64, scratch_operands = 5 : i64, tpu.core_type = #tpu.core_type<tc>, window_params = [{transform_indices = @transform_0, window_bounds = array<i64: 1, 8, 16>}, {transform_indices = @transform_1, window_bounds = array<i64: 1, 1, 128>}, {transform_indices = @transform_2, window_bounds = array<i64: 1, 16, 256>}, {transform_indices = @transform_3, window_bounds = array<i64: 1, 1, 256>}, {transform_indices = @transform_4, window_bounds = array<i64: 1, 8, 128>}]} {
    %c0_i32 = arith.constant 0 : i32
    %0 = arith.cmpi eq, %arg2, %c0_i32 : i32
    %1 = arith.extui %0 : i1 to i32
    %c0_i32_0 = arith.constant 0 : i32
    %2 = arith.cmpi ne, %1, %c0_i32_0 : i32
    scf.if %2 {
      %cst_54 = arith.constant 0.000000e+00 : f32
      %120 = vector.broadcast %cst_54 : f32 to vector<1x128xf32>
      %c0_55 = arith.constant 0 : index
      %c0_56 = arith.constant 0 : index
      %121 = vector.load %arg8[%c0_55, %c0_56] : memref<1x128xf32, #tpu.memory_space<vmem>>, vector<1x128xf32>
      tpu.vector_store %arg8[%c0_55, %c0_56], %120 {strides = array<i32>} : memref<1x128xf32, #tpu.memory_space<vmem>>, vector<1x128xf32>,
      %c0_57 = arith.constant 0 : index
      %c0_58 = arith.constant 0 : index
      %c0_59 = arith.constant 0 : index
      %122 = vector.load %arg4[%c0_57, %c0_58, %c0_59] : memref<1x1x128xf32, #tpu.memory_space<vmem>>, vector<1x1x128xf32>
      %123 = vector.shape_cast %122 : vector<1x1x128xf32> to vector<1x128xf32>
      %c0_60 = arith.constant 0 : index
      %c0_61 = arith.constant 0 : index
      %124 = vector.load %arg9[%c0_60, %c0_61] : memref<1x128xf32, #tpu.memory_space<vmem>>, vector<1x128xf32>
      tpu.vector_store %arg9[%c0_60, %c0_61], %123 {strides = array<i32>} : memref<1x128xf32, #tpu.memory_space<vmem>>, vector<1x128xf32>,
      %cst_62 = arith.constant 1.000000e+00 : f32
      %125 = vector.broadcast %cst_62 : f32 to vector<1x128xf32>
      %c0_63 = arith.constant 0 : index
      %c0_64 = arith.constant 0 : index
      %126 = vector.load %arg10[%c0_63, %c0_64] : memref<1x128xf32, #tpu.memory_space<vmem>>, vector<1x128xf32>
      tpu.vector_store %arg10[%c0_63, %c0_64], %125 {strides = array<i32>} : memref<1x128xf32, #tpu.memory_space<vmem>>, vector<1x128xf32>,
    } else {
    }
    %c0 = arith.constant 0 : index
    %c0_1 = arith.constant 0 : index
    %c0_2 = arith.constant 0 : index
    %3 = vector.load %arg3[%c0, %c0_1, %c0_2] : memref<1x8x16xf32, #tpu.memory_space<vmem>>, vector<1x8x16xf32>
    %4 = vector.shape_cast %3 : vector<1x8x16xf32> to vector<8x16xf32>
    %c0_3 = arith.constant 0 : index
    %c0_4 = arith.constant 0 : index
    %c0_5 = arith.constant 0 : index
    %5 = vector.load %arg5[%c0_3, %c0_4, %c0_5] : memref<1x16x256xf32, #tpu.memory_space<vmem>>, vector<1x16x256xf32>
    %6 = vector.shape_cast %5 : vector<1x16x256xf32> to vector<16x256xf32>
    %cst = arith.constant dense<0.000000e+00> : vector<8x256xf32>
    %7 = tpu.matmul %4, %6, %cst {dimension_numbers = #tpu.dot_dimension_numbers<[1], [0], [0], [1], [0, 0, 1, 1], [], []>} : vector<8x16xf32>, vector<16x256xf32>, vector<8x256xf32> -> vector<8x256xf32>
    %c0_6 = arith.constant 0 : index
    %c0_7 = arith.constant 0 : index
    %c0_8 = arith.constant 0 : index
    %8 = vector.load %arg6[%c0_6, %c0_7, %c0_8] : memref<1x1x256xf32, #tpu.memory_space<vmem>>, vector<1x1x256xf32>
    %9 = vector.shape_cast %8 : vector<1x1x256xf32> to vector<1x256xf32>
    %10 = vector.broadcast %9 : vector<1x256xf32> to vector<8x256xf32>
    %11 = arith.addf %7, %10 : vector<8x256xf32>
    %12 = vector.extract_strided_slice %11 {offsets = [0, 0], sizes = [8, 128], strides = [1, 1]} : vector<8x256xf32> to vector<8x128xf32>
    %13 = vector.extract_strided_slice %11 {offsets = [0, 128], sizes = [8, 128], strides = [1, 1]} : vector<8x256xf32> to vector<8x128xf32>
    %cst_9 = arith.constant 0.000000e+00 : f32
    %14 = vector.broadcast %cst_9 : f32 to vector<8x128xf32>
    %15 = arith.maximumf %12, %14 : vector<8x128xf32>
    %16 = vector.broadcast %cst_9 : f32 to vector<8x128xf32>
    %17 = arith.subf %12, %16 : vector<8x128xf32>
    %18 = arith.cmpf one, %17, %17 : vector<8x128xf32>
    %19 = vector.broadcast %cst_9 : f32 to vector<8x128xf32>
    %20 = arith.addf %12, %19 : vector<8x128xf32>
    %21 = math.absf %17 : vector<8x128xf32>
    %cst_10 = arith.constant 0.000000e+00 : f32
    %22 = vector.broadcast %cst_10 : f32 to vector<8x128xf32>
    %23 = arith.subf %22, %21 : vector<8x128xf32>
    %24 = math.exp %23 : vector<8x128xf32>
    %25 = math.log1p %24 : vector<8x128xf32>
    %26 = arith.addf %15, %25 : vector<8x128xf32>
    %27 = arith.select %18, %20, %26 : vector<8x128xi1>, vector<8x128xf32>
    %cst_11 = arith.constant 0.000000e+00 : f32
    %28 = vector.broadcast %cst_11 : f32 to vector<8x128xf32>
    %29 = arith.subf %28, %27 : vector<8x128xf32>
    %30 = arith.addf %12, %29 : vector<8x128xf32>
    %cst_12 = arith.constant 0.000000e+00 : f32
    %31 = vector.broadcast %cst_12 : f32 to vector<8x128xf32>
    %32 = arith.cmpf oge, %13, %31 : vector<8x128xf32>
    %cst_13 = arith.constant 5.000000e-01 : f32
    %33 = vector.broadcast %cst_13 : f32 to vector<8x128xf32>
    %34 = arith.addf %13, %33 : vector<8x128xf32>
    %35 = arith.negf %13 : vector<8x128xf32>
    %36 = math.exp %35 : vector<8x128xf32>
    %cst_14 = arith.constant 1.000000e+00 : f32
    %37 = vector.broadcast %cst_14 : f32 to vector<8x128xf32>
    %38 = arith.addf %37, %36 : vector<8x128xf32>
    %39 = arith.divf %37, %38 : vector<8x128xf32>
    %40 = arith.select %32, %34, %39 : vector<8x128xi1>, vector<8x128xf32>
    %41 = math.log %40 : vector<8x128xf32>
    %42 = arith.addf %30, %41 : vector<8x128xf32>
    %c0_15 = arith.constant 0 : index
    %c0_16 = arith.constant 0 : index
    %43 = vector.load %arg11[%c0_15, %c0_16] : memref<8x128xf32, #tpu.memory_space<vmem>>, vector<8x128xf32>
    tpu.vector_store %arg11[%c0_15, %c0_16], %29 {strides = array<i32>} : memref<8x128xf32, #tpu.memory_space<vmem>>, vector<8x128xf32>,
    %c0_17 = arith.constant 0 : index
    %c0_18 = arith.constant 0 : index
    %44 = vector.load %arg12[%c0_17, %c0_18] : memref<8x128xf32, #tpu.memory_space<vmem>>, vector<8x128xf32>
    tpu.vector_store %arg12[%c0_17, %c0_18], %42 {strides = array<i32>} : memref<8x128xf32, #tpu.memory_space<vmem>>, vector<8x128xf32>,
    %45 = tpu.iota {dimensions = array<i32: 0>} : vector<8x128xi32>
    %c0_19 = arith.constant 0 : index
    %c0_20 = arith.constant 0 : index
    %46 = vector.load %arg8[%c0_19, %c0_20] : memref<1x128xf32, #tpu.memory_space<vmem>>, vector<1x128xf32>
    %c0_21 = arith.constant 0 : index
    %c0_22 = arith.constant 0 : index
    %47 = vector.load %arg9[%c0_21, %c0_22] : memref<1x128xf32, #tpu.memory_space<vmem>>, vector<1x128xf32>
    %c0_23 = arith.constant 0 : index
    %c0_24 = arith.constant 0 : index
    %48 = vector.load %arg10[%c0_23, %c0_24] : memref<1x128xf32, #tpu.memory_space<vmem>>, vector<1x128xf32>
    %c0_i32_25 = arith.constant 0 : i32
    %c8_i32 = arith.constant 8 : i32
    %49 = arith.muli %c0_i32_25, %c8_i32 : i32
    %50 = tpu.assume_multiple %49, 8 : i32
    %51 = arith.index_cast %50 : i32 to index
    %c0_26 = arith.constant 0 : index
    %52 = vector.load %arg11[%51, %c0_26] : memref<8x128xf32, #tpu.memory_space<vmem>>, vector<8x128xf32>
    %53 = arith.index_cast %50 : i32 to index
    %c0_27 = arith.constant 0 : index
    %54 = vector.load %arg12[%53, %c0_27] : memref<8x128xf32, #tpu.memory_space<vmem>>, vector<8x128xf32>
    %c1_i32 = arith.constant 1 : i32
    %55 = tpu.dynamic_rotate %52 by %c1_i32 dim 0 : vector<8x128xf32>, i32 -> vector<8x128xf32>
    %c1_i32_28 = arith.constant 1 : i32
    %56 = vector.broadcast %c1_i32_28 : i32 to vector<8x128xi32>
    %57 = arith.cmpi sge, %45, %56 : vector<8x128xi32>
    %cst_29 = arith.constant 0.000000e+00 : f32
    %58 = vector.broadcast %cst_29 : f32 to vector<8x128xf32>
    %59 = arith.select %57, %55, %58 : vector<8x128xi1>, vector<8x128xf32>
    %60 = arith.addf %52, %59 : vector<8x128xf32>
    %c2_i32 = arith.constant 2 : i32
    %61 = tpu.dynamic_rotate %60 by %c2_i32 dim 0 : vector<8x128xf32>, i32 -> vector<8x128xf32>
    %c2_i32_30 = arith.constant 2 : i32
    %62 = vector.broadcast %c2_i32_30 : i32 to vector<8x128xi32>
    %63 = arith.cmpi sge, %45, %62 : vector<8x128xi32>
    %cst_31 = arith.constant 0.000000e+00 : f32
    %64 = vector.broadcast %cst_31 : f32 to vector<8x128xf32>
    %65 = arith.select %63, %61, %64 : vector<8x128xi1>, vector<8x128xf32>
    %66 = arith.addf %60, %65 : vector<8x128xf32>
    %c4_i32 = arith.constant 4 : i32
    %67 = tpu.dynamic_rotate %66 by %c4_i32 dim 0 : vector<8x128xf32>, i32 -> vector<8x128xf32>
    %c4_i32_32 = arith.constant 4 : i32
    %68 = vector.broadcast %c4_i32_32 : i32 to vector<8x128xi32>
    %69 = arith.cmpi sge, %45, %68 : vector<8x128xi32>
    %cst_33 = arith.constant 0.000000e+00 : f32
    %70 = vector.broadcast %cst_33 : f32 to vector<8x128xf32>
    %71 = arith.select %69, %67, %70 : vector<8x128xi1>, vector<8x128xf32>
    %72 = arith.addf %66, %71 : vector<8x128xf32>
    %73 = vector.broadcast %46 : vector<1x128xf32> to vector<8x128xf32>
    %74 = arith.addf %73, %72 : vector<8x128xf32>
    %75 = arith.subf %54, %74 : vector<8x128xf32>
    %cst_34 = arith.constant dense<0xFF800000> : vector<128xf32>
    %76 = vector.multi_reduction <maximumf>, %75, %cst_34 [0] : vector<8x128xf32> to vector<128xf32>
    %77 = vector.shape_cast %76 : vector<128xf32> to vector<1x128xf32>
    %78 = arith.maximumf %47, %77 : vector<1x128xf32>
    %79 = vector.broadcast %78 : vector<1x128xf32> to vector<8x128xf32>
    %80 = arith.subf %75, %79 : vector<8x128xf32>
    %81 = math.exp %80 : vector<8x128xf32>
    %82 = arith.subf %47, %78 : vector<1x128xf32>
    %83 = math.exp %82 : vector<1x128xf32>
    %84 = arith.mulf %48, %83 : vector<1x128xf32>
    %c1_i32_35 = arith.constant 1 : i32
    %85 = tpu.dynamic_rotate %81 by %c1_i32_35 dim 0 : vector<8x128xf32>, i32 -> vector<8x128xf32>
    %c1_i32_36 = arith.constant 1 : i32
    %86 = vector.broadcast %c1_i32_36 : i32 to vector<8x128xi32>
    %87 = arith.cmpi sge, %45, %86 : vector<8x128xi32>
    %cst_37 = arith.constant 0.000000e+00 : f32
    %88 = vector.broadcast %cst_37 : f32 to vector<8x128xf32>
    %89 = arith.select %87, %85, %88 : vector<8x128xi1>, vector<8x128xf32>
    %90 = arith.addf %81, %89 : vector<8x128xf32>
    %c2_i32_38 = arith.constant 2 : i32
    %91 = tpu.dynamic_rotate %90 by %c2_i32_38 dim 0 : vector<8x128xf32>, i32 -> vector<8x128xf32>
    %c2_i32_39 = arith.constant 2 : i32
    %92 = vector.broadcast %c2_i32_39 : i32 to vector<8x128xi32>
    %93 = arith.cmpi sge, %45, %92 : vector<8x128xi32>
    %cst_40 = arith.constant 0.000000e+00 : f32
    %94 = vector.broadcast %cst_40 : f32 to vector<8x128xf32>
    %95 = arith.select %93, %91, %94 : vector<8x128xi1>, vector<8x128xf32>
    %96 = arith.addf %90, %95 : vector<8x128xf32>
    %c4_i32_41 = arith.constant 4 : i32
    %97 = tpu.dynamic_rotate %96 by %c4_i32_41 dim 0 : vector<8x128xf32>, i32 -> vector<8x128xf32>
    %c4_i32_42 = arith.constant 4 : i32
    %98 = vector.broadcast %c4_i32_42 : i32 to vector<8x128xi32>
    %99 = arith.cmpi sge, %45, %98 : vector<8x128xi32>
    %cst_43 = arith.constant 0.000000e+00 : f32
    %100 = vector.broadcast %cst_43 : f32 to vector<8x128xf32>
    %101 = arith.select %99, %97, %100 : vector<8x128xi1>, vector<8x128xf32>
    %102 = arith.addf %96, %101 : vector<8x128xf32>
    %103 = vector.broadcast %84 : vector<1x128xf32> to vector<8x128xf32>
    %104 = arith.addf %103, %102 : vector<8x128xf32>
    %105 = vector.broadcast %78 : vector<1x128xf32> to vector<8x128xf32>
    %106 = arith.addf %74, %105 : vector<8x128xf32>
    %cst_44 = arith.constant 8.000000e+01 : f32
    %107 = vector.broadcast %cst_44 : f32 to vector<8x128xf32>
    %108 = arith.minimumf %106, %107 : vector<8x128xf32>
    %109 = math.exp %108 : vector<8x128xf32>
    %110 = arith.mulf %109, %104 : vector<8x128xf32>
    %c0_45 = arith.constant 0 : index
    %111 = arith.index_cast %50 : i32 to index
    %c0_46 = arith.constant 0 : index
    %112 = vector.load %arg7[%c0_45, %111, %c0_46] : memref<1x8x128xf32, #tpu.memory_space<vmem>>, vector<1x8x128xf32>
    %113 = vector.shape_cast %112 : vector<1x8x128xf32> to vector<8x128xf32>
    %114 = vector.shape_cast %110 : vector<8x128xf32> to vector<1x8x128xf32>
    tpu.vector_store %arg7[%c0_45, %111, %c0_46], %114 {strides = array<i32>} : memref<1x8x128xf32, #tpu.memory_space<vmem>>, vector<1x8x128xf32>,
    %115 = vector.extract_strided_slice %74 {offsets = [7, 0], sizes = [1, 128], strides = [1, 1]} : vector<8x128xf32> to vector<1x128xf32>
    %116 = vector.extract_strided_slice %104 {offsets = [7, 0], sizes = [1, 128], strides = [1, 1]} : vector<8x128xf32> to vector<1x128xf32>
    %c1_i32_47 = arith.constant 1 : i32
    %c0_48 = arith.constant 0 : index
    %c0_49 = arith.constant 0 : index
    %117 = vector.load %arg8[%c0_48, %c0_49] : memref<1x128xf32, #tpu.memory_space<vmem>>, vector<1x128xf32>
    tpu.vector_store %arg8[%c0_48, %c0_49], %115 {strides = array<i32>} : memref<1x128xf32, #tpu.memory_space<vmem>>, vector<1x128xf32>,
    %c0_50 = arith.constant 0 : index
    %c0_51 = arith.constant 0 : index
    %118 = vector.load %arg9[%c0_50, %c0_51] : memref<1x128xf32, #tpu.memory_space<vmem>>, vector<1x128xf32>
    tpu.vector_store %arg9[%c0_50, %c0_51], %78 {strides = array<i32>} : memref<1x128xf32, #tpu.memory_space<vmem>>, vector<1x128xf32>,
    %c0_52 = arith.constant 0 : index
    %c0_53 = arith.constant 0 : index
    %119 = vector.load %arg10[%c0_52, %c0_53] : memref<1x128xf32, #tpu.memory_space<vmem>>, vector<1x128xf32>
    tpu.vector_store %arg10[%c0_52, %c0_53], %116 {strides = array<i32>} : memref<1x128xf32, #tpu.memory_space<vmem>>, vector<1x128xf32>,
    return
  }
  func.func @transform_0(%arg0: i32, %arg1: i32, %arg2: i32) -> (i32, i32, i32) {
    %c0_i32 = arith.constant 0 : i32
    %c0_i32_0 = arith.constant 0 : i32
    return %arg0, %arg2, %c0_i32 : i32, i32, i32
  }
  func.func @transform_1(%arg0: i32, %arg1: i32, %arg2: i32) -> (i32, i32, i32) {
    %c0_i32 = arith.constant 0 : i32
    %c0_i32_0 = arith.constant 0 : i32
    return %arg0, %c0_i32, %arg1 : i32, i32, i32
  }
  func.func @transform_2(%arg0: i32, %arg1: i32, %arg2: i32) -> (i32, i32, i32) {
    %c0_i32 = arith.constant 0 : i32
    %c0_i32_0 = arith.constant 0 : i32
    %c0_i32_1 = arith.constant 0 : i32
    return %arg1, %c0_i32, %c0_i32_0 : i32, i32, i32
  }
  func.func @transform_3(%arg0: i32, %arg1: i32, %arg2: i32) -> (i32, i32, i32) {
    %c0_i32 = arith.constant 0 : i32
    %c0_i32_0 = arith.constant 0 : i32
    %c0_i32_1 = arith.constant 0 : i32
    return %arg1, %c0_i32, %c0_i32_0 : i32, i32, i32
  }
  func.func @transform_4(%arg0: i32, %arg1: i32, %arg2: i32) -> (i32, i32, i32) {
    %c0_i32 = arith.constant 0 : i32
    return %arg0, %arg2, %arg1 : i32, i32, i32
  }
}

</mosaic_0001>

<llo_original>
// kernel: mingru_forward_parallel.1
$region0: #{mingru_forward_parallel.1}
  #allocation0 [shape = 'u32[]', space=smem, size = 0x4, offset = 0x4, fixed_abs, tag = 'smem constant byte address 0x4 - core index']
  #allocation1 [shape = 'u32[72,128]{1,0:T(1,128)}', space=vmem, size = 0x9000, scoped, tag = 'internal scratch']
  #allocation2 [shape = 'f32[1,128]{1,0:T(1,128)}', space=vmem, size = 0x200, scoped, tag = 'scratch operand']
  #allocation3 [shape = 'f32[1,128]{1,0:T(1,128)}', space=vmem, size = 0x200, scoped, tag = 'scratch operand']
  #allocation4 [shape = 'f32[1,128]{1,0:T(1,128)}', space=vmem, size = 0x200, scoped, tag = 'scratch operand']
  #allocation5 [shape = 'f32[8,128]{1,0:T(8,128)}', space=vmem, size = 0x1000, scoped, tag = 'scratch operand']
  #allocation6 [shape = 'f32[8,128]{1,0:T(8,128)}', space=vmem, size = 0x1000, scoped, tag = 'scratch operand']
  %s0 = inlined_call_operand.vmem [shape: f32[2,8,16], index: 0, kind: input, shape index: {}]
  %s1 = inlined_call_operand.vmem [shape: f32[2,1,128], index: 1, kind: input, shape index: {}]
  %s2 = inlined_call_operand.vmem [shape: f32[1,16,256], index: 2, kind: input, shape index: {}]
  %s3 = inlined_call_operand.vmem [shape: f32[1,1,256], index: 3, kind: input, shape index: {}]
  %s4 = inlined_call_operand.vmem [shape: f32[2,8,128], index: 4, kind: output, shape index: {}]
  %s5 = sld [smem:[#allocation0]]
  $region53: #{mingru_forward_parallel.1} parent=0
    _
  %s7 = ssub.s32 1, %s5
  %s8 = scalar_select 0, %s7, %s5
  loop: start=0, step=1, limit=4
  $region2: #{mingru_forward_parallel.1} parent=0 // loop_pre_header
    _
  $region3: #{mingru_forward_parallel.1} parent=0 // loop_header
    %s10 = sphi 0, %s14
    %p11 = scmp.ge.s32.totalorder %s10, 4
    %s17 = sphi 0, %s36
    %s18 = sphi 0, %s32
    %s19 = sphi 0, %s28
    %s20 = sphi 0, %s17
    %s21 = sphi 0, %s18
    %s22 = sphi 0, %s19
    %s23 = sphi 0, %s20
    %s24 = sphi 0, %s21
    %s25 = sphi 0, %s22
    %s41 = sphi 0, %s43
    %s44 = sphi 0, %s41
    %s45 = sphi 0, %s44
    %s61 = sphi 0, %s45
    %s69 = sphi 0, %s71
    %s72 = sphi 0, %s69
    %s73 = sphi 0, %s72
    %s89 = sphi 0, %s73
    %s95 = sphi 0, %s97
    %s98 = sphi 0, %s95
    %s99 = sphi 0, %s98
    %s115 = sphi 0, %s99
    %s121 = sphi 0, %s123
    %s124 = sphi 0, %s121
    %s125 = sphi 0, %s124
    %s141 = sphi 0, %s125
    %s151 = sphi 0, %s153
    %s154 = sphi 0, %s151
    %s155 = sphi 0, %s154
    %s171 = sphi 0, %s155
  $region4: #{mingru_forward_parallel.1} parent=0 // loop_header_branch
    %13 = sbr.rel (%p11) target = $region8
  $region5: #{mingru_forward_parallel.1} parent=0 // loop_body
    %s15 = ssub.s32 %s10, 1
    %s16 = ssub.s32 %s10, 2
    %s26 = sadd.s32 1, %s19
    %p27 = scmp.ge.s32.totalorder %s26, 1
    %s28 = scalar_select %p27, 0, %s26
    %s29 = sadd.s32 1, %s18
    %s30 = scalar_select %p27, %s29, %s18
    %p31 = scmp.ge.s32.totalorder %s30, 1
    %s32 = scalar_select %p31, 0, %s30
    %s33 = sadd.s32 1, %s17
    %s34 = scalar_select %p31, %s33, %s17
    %p35 = scmp.ge.s32.totalorder %s34, 2
    %s36 = scalar_select %p35, 0, %s34
    %s37 = ssub.s32 %s17, %s36
    %s38 = ssub.s32 %s19, %s28
    %s39 = sor.u32 %s37, %s38
    %p40 = scmp.eq.s32.totalorder %s39, 0
    %s42 = sadd.s32 %s41, 1
    %s43 = scalar_select %p40, %s41, %s42
    %p46 = pneg %p40
    %p47 = scmp.eq.s32.totalorder %s10, 1
    %p48 = por %p46, %p47
    %p49 = scmp.ne.s32.totalorder %s41, %s44
    %p50 = scmp.eq.s32.totalorder %s10, 0
    %p51 = por %p49, %p50
    %p52 = scmp.ne.s32.totalorder %s41, %s44
    %p53 = scmp.eq.s32.totalorder %s15, 1
    %p54 = por %p52, %p53
    %p55 = scmp.ne.s32.totalorder %s44, %s45
    %p56 = scmp.eq.s32.totalorder %s15, 0
    %p57 = por %p55, %p56
    %p58 = scmp.ne.s32.totalorder %s44, %s45
    %p59 = scmp.eq.s32.totalorder %s16, 1
    %p60 = por %p58, %p59
    %p62 = scmp.ne.s32.totalorder %s45, %s61
    %p63 = scmp.eq.s32.totalorder %s16, 0
    %p64 = por %p62, %p63
    %s65 = ssub.s32 %s17, %s36
    %s66 = ssub.s32 %s18, %s32
    %s67 = sor.u32 %s65, %s66
    %p68 = scmp.eq.s32.totalorder %s67, 0
    %s70 = sadd.s32 %s69, 1
    %s71 = scalar_select %p68, %s69, %s70
    %p74 = pneg %p68
    %p75 = scmp.eq.s32.totalorder %s10, 1
    %p76 = por %p74, %p75
    %p77 = scmp.ne.s32.totalorder %s69, %s72
    %p78 = scmp.eq.s32.totalorder %s10, 0
    %p79 = por %p77, %p78
    %p80 = scmp.ne.s32.totalorder %s69, %s72
    %p81 = scmp.eq.s32.totalorder %s15, 1
    %p82 = por %p80, %p81
    %p83 = scmp.ne.s32.totalorder %s72, %s73
    %p84 = scmp.eq.s32.totalorder %s15, 0
    %p85 = por %p83, %p84
    %p86 = scmp.ne.s32.totalorder %s72, %s73
    %p87 = scmp.eq.s32.totalorder %s16, 1
    %p88 = por %p86, %p87
    %p90 = scmp.ne.s32.totalorder %s73, %s89
    %p91 = scmp.eq.s32.totalorder %s16, 0
    %p92 = por %p90, %p91
    %s93 = ssub.s32 %s18, %s32
    %p94 = scmp.eq.s32.totalorder %s93, 0
    %s96 = sadd.s32 %s95, 1
    %s97 = scalar_select %p94, %s95, %s96
    %p100 = pneg %p94
    %p101 = scmp.eq.s32.totalorder %s10, 1
    %p102 = por %p100, %p101
    %p103 = scmp.ne.s32.totalorder %s95, %s98
    %p104 = scmp.eq.s32.totalorder %s10, 0
    %p105 = por %p103, %p104
    %p106 = scmp.ne.s32.totalorder %s95, %s98
    %p107 = scmp.eq.s32.totalorder %s15, 1
    %p108 = por %p106, %p107
    %p109 = scmp.ne.s32.totalorder %s98, %s99
    %p110 = scmp.eq.s32.totalorder %s15, 0
    %p111 = por %p109, %p110
    %p112 = scmp.ne.s32.totalorder %s98, %s99
    %p113 = scmp.eq.s32.totalorder %s16, 1
    %p114 = por %p112, %p113
    %p116 = scmp.ne.s32.totalorder %s99, %s115
    %p117 = scmp.eq.s32.totalorder %s16, 0
    %p118 = por %p116, %p117
    %s119 = ssub.s32 %s18, %s32
    %p120 = scmp.eq.s32.totalorder %s119, 0
    %s122 = sadd.s32 %s121, 1
    %s123 = scalar_select %p120, %s121, %s122
    %p126 = pneg %p120
    %p127 = scmp.eq.s32.totalorder %s10, 1
    %p128 = por %p126, %p127
    %p129 = scmp.ne.s32.totalorder %s121, %s124
    %p130 = scmp.eq.s32.totalorder %s10, 0
    %p131 = por %p129, %p130
    %p132 = scmp.ne.s32.totalorder %s121, %s124
    %p133 = scmp.eq.s32.totalorder %s15, 1
    %p134 = por %p132, %p133
    %p135 = scmp.ne.s32.totalorder %s124, %s125
    %p136 = scmp.eq.s32.totalorder %s15, 0
    %p137 = por %p135, %p136
    %p138 = scmp.ne.s32.totalorder %s124, %s125
    %p139 = scmp.eq.s32.totalorder %s16, 1
    %p140 = por %p138, %p139
    %p142 = scmp.ne.s32.totalorder %s125, %s141
    %p143 = scmp.eq.s32.totalorder %s16, 0
    %p144 = por %p142, %p143
    %s145 = ssub.s32 %s17, %s36
    %s146 = ssub.s32 %s19, %s28
    %s147 = sor.u32 %s145, %s146
    %s148 = ssub.s32 %s18, %s32
    %s149 = sor.u32 %s147, %s148
    %p150 = scmp.eq.s32.totalorder %s149, 0
    %s152 = sadd.s32 %s151, 1
    %s153 = scalar_select %p150, %s151, %s152
    %p156 = pneg %p150
    %p157 = scmp.eq.s32.totalorder %s10, 1
    %p158 = por %p156, %p157
    %p159 = scmp.ne.s32.totalorder %s151, %s154
    %p160 = scmp.eq.s32.totalorder %s10, 0
    %p161 = por %p159, %p160
    %p162 = scmp.ne.s32.totalorder %s151, %s154
    %p163 = scmp.eq.s32.totalorder %s15, 1
    %p164 = por %p162, %p163
    %p165 = scmp.ne.s32.totalorder %s154, %s155
    %p166 = scmp.eq.s32.totalorder %s15, 0
    %p167 = por %p165, %p166
    %p168 = scmp.ne.s32.totalorder %s154, %s155
    %p169 = scmp.eq.s32.totalorder %s16, 1
    %p170 = por %p168, %p169
    %p172 = scmp.ne.s32.totalorder %s155, %s171
    %p173 = scmp.eq.s32.totalorder %s16, 0
    %p174 = por %p172, %p173
    %p175 = scmp.le.s32.totalorder 1, %s10
    %p176 = scmp.lt.s32.totalorder %s10, 3
    %p177 = pnand %p175, %p176
    %p178 = pneg %p177
    // Predicated region
    $region9: #{mingru_forward_parallel.1} parent=5 // pred_check
      _
    $region10: #{mingru_forward_parallel.1} parent=5 // pred_check_branch
      %180 = sbr.rel (%p177) target = $region12
    $region11: #{mingru_forward_parallel.1} parent=5 // pred_region
      %s181 = ssub.s32 %s10, 1
      // Predicated region
      $region13: #{mingru_forward_parallel.1} parent=11 // pred_check
        %p182 = pneg %p111
      $region14: #{mingru_forward_parallel.1} parent=11 // pred_check_branch
        %184 = sbr.rel (%p182) target = $region16
      $region15: #{mingru_forward_parallel.1} parent=11 // pred_region
        %p185 = scmp.lt.s32.totalorder %s21, 0
        %s186 = scalar_select %p185, %s21, 0
        %s187 = smul.addr %s186, 4
        %s188 = smul.addr %s187, 8
        %s189 = scalar_lea.vmem %s2, %s188
      $region16: #{mingru_forward_parallel.1} parent=11 // pred_fallthru
        _
      // Predicated region
      $region17: #{mingru_forward_parallel.1} parent=11 // pred_check
        %p190 = pneg %p137
      $region18: #{mingru_forward_parallel.1} parent=11 // pred_check_branch
        %192 = sbr.rel (%p190) target = $region20
      $region19: #{mingru_forward_parallel.1} parent=11 // pred_region
        %p193 = scmp.lt.s32.totalorder %s21, 0
        %s194 = scalar_select %p193, %s21, 0
        %s195 = smul.addr %s194, 2
        %s196 = scalar_lea.vmem %s3, %s195
      $region20: #{mingru_forward_parallel.1} parent=11 // pred_fallthru
        _
    $region12: #{mingru_forward_parallel.1} parent=5 // pred_fallthru
      _
    %p197 = scmp.lt.s32.totalorder %s10, 2
    // Predicated region
    $region21: #{mingru_forward_parallel.1} parent=5 // pred_check
      %p198 = pneg %p197
    $region22: #{mingru_forward_parallel.1} parent=5 // pred_check_branch
      %200 = sbr.rel (%p198) target = $region24
    $region23: #{mingru_forward_parallel.1} parent=5 // pred_region
      // Predicated region
      $region25: #{mingru_forward_parallel.1} parent=23 // pred_check
        %p201 = pneg %p51
      $region26: #{mingru_forward_parallel.1} parent=23 // pred_check_branch
        %203 = sbr.rel (%p201) target = $region28
      $region27: #{mingru_forward_parallel.1} parent=23 // pred_region
        %p204 = scmp.lt.s32.totalorder %s17, 1
        %s205 = scalar_select %p204, %s17, 1
        %p206 = scmp.lt.s32.totalorder %s19, 0
        %s207 = scalar_select %p206, %s19, 0
        %s208 = sadd.s32 %s207, %s205
        %s209 = smul.addr %s208, 8
        %s210 = scalar_lea.vmem %s0, %s209
      $region28: #{mingru_forward_parallel.1} parent=23 // pred_fallthru
        _
      // Predicated region
      $region29: #{mingru_forward_parallel.1} parent=23 // pred_check
        %p211 = pneg %p79
      $region30: #{mingru_forward_parallel.1} parent=23 // pred_check_branch
        %213 = sbr.rel (%p211) target = $region32
      $region31: #{mingru_forward_parallel.1} parent=23 // pred_region
        %p214 = scmp.lt.s32.totalorder %s17, 1
        %s215 = scalar_select %p214, %s17, 1
        %p216 = scmp.lt.s32.totalorder %s18, 0
        %s217 = scalar_select %p216, %s18, 0
        %s218 = sadd.s32 %s217, %s215
        %s219 = scalar_lea.vmem %s1, %s218
      $region32: #{mingru_forward_parallel.1} parent=23 // pred_fallthru
        _
    $region24: #{mingru_forward_parallel.1} parent=5 // pred_fallthru
      _
    %p220 = scmp.le.s32.totalorder 1, %s10
    %p221 = scmp.lt.s32.totalorder %s10, 3
    %p222 = pnand %p220, %p221
    %p223 = pneg %p222
    // Predicated region
    $region33: #{mingru_forward_parallel.1} parent=5 // pred_check
      _
    $region34: #{mingru_forward_parallel.1} parent=5 // pred_check_branch
      %225 = sbr.rel (%p222) target = $region36
    $region35: #{mingru_forward_parallel.1} parent=5 // pred_region
      %s226 = ssub.s32 %s10, 1
      %p227 = scmp.lt.s32.totalorder %s20, 1
      %s228 = scalar_select %p227, %s20, 1
      %p229 = scmp.lt.s32.totalorder %s22, 0
      %s230 = scalar_select %p229, %s22, 0
      %s231 = sadd.s32 %s230, %s228
      %s232 = smul.addr %s231, 8
      %s233 = scalar_lea.vmem %s0, %s232
      %p234 = pneg %p57
      %p235 = pneg %p54
      %p236 = scmp.lt.s32.totalorder %s20, 1
      %s237 = scalar_select %p236, %s20, 1
      %p238 = scmp.lt.s32.totalorder %s21, 0
      %s239 = scalar_select %p238, %s21, 0
      %s240 = sadd.s32 %s239, %s237
      %s241 = scalar_lea.vmem %s1, %s240
      %p242 = pneg %p85
      %p243 = pneg %p82
      %p244 = scmp.lt.s32.totalorder %s21, 0
      %s245 = scalar_select %p244, %s21, 0
      %s246 = smul.addr %s245, 4
      %s247 = smul.addr %s246, 8
      %s248 = scalar_lea.vmem %s2, %s247
      %p249 = pneg %p111
      %p250 = pneg %p108
      %p251 = scmp.lt.s32.totalorder %s21, 0
      %s252 = scalar_select %p251, %s21, 0
      %s253 = smul.addr %s252, 2
      %s254 = scalar_lea.vmem %s3, %s253
      %p255 = pneg %p137
      %p256 = pneg %p134
      %p257 = pneg %p167
      %p258 = pneg %p164
      %p259 = scmp.lt.s32.totalorder %s20, 1
      %s260 = scalar_select %p259, %s20, 1
      %p261 = scmp.lt.s32.totalorder %s22, 0
      %s262 = scalar_select %p261, %s22, 0
      %p263 = scmp.lt.s32.totalorder %s21, 0
      %s264 = scalar_select %p263, %s21, 0
      %s265 = sadd.s32 %s264, %s262
      %s266 = sadd.s32 %s265, %s260
      %s267 = smul.addr %s266, 8
      %s268 = scalar_lea.vmem %s4, %s267
      %p269 = scmp.lt.s32.totalorder %s20, 1
      %s270 = scalar_select %p269, %s20, 1
      %p271 = scmp.lt.s32.totalorder %s22, 0
      %s272 = scalar_select %p271, %s22, 0
      %s273 = sadd.s32 %s272, %s270
      %s274 = smul.addr %s273, 8
      %s275 = scalar_lea.vmem %s0, %s274
      %p276 = scmp.lt.s32.totalorder %s20, 1
      %s277 = scalar_select %p276, %s20, 1
      %p278 = scmp.lt.s32.totalorder %s21, 0
      %s279 = scalar_select %p278, %s21, 0
      %s280 = sadd.s32 %s279, %s277
      %s281 = scalar_lea.vmem %s1, %s280
      %p282 = scmp.lt.s32.totalorder %s21, 0
      %s283 = scalar_select %p282, %s21, 0
      %s284 = smul.addr %s283, 4
      %s285 = smul.addr %s284, 8
      %s286 = scalar_lea.vmem %s2, %s285
      %p287 = scmp.lt.s32.totalorder %s21, 0
      %s288 = scalar_select %p287, %s21, 0
      %s289 = smul.addr %s288, 2
      %s290 = scalar_lea.vmem %s3, %s289
      %p291 = scmp.lt.s32.totalorder %s20, 1
      %s292 = scalar_select %p291, %s20, 1
      %p293 = scmp.lt.s32.totalorder %s22, 0
      %s294 = scalar_select %p293, %s22, 0
      %p295 = scmp.lt.s32.totalorder %s21, 0
      %s296 = scalar_select %p295, %s21, 0
      %s297 = sadd.s32 %s296, %s294
      %s298 = sadd.s32 %s297, %s292
      %s299 = smul.addr %s298, 8
      %s300 = scalar_lea.vmem %s4, %s299
      %p301 = scmp.eq.s32.totalorder %s22, 0
      // Predicated region
      $region37: #{mingru_forward_parallel.1} parent=35 // pred_check
        %p302 = pneg %p301
      $region38: #{mingru_forward_parallel.1} parent=35 // pred_check_branch
        %304 = sbr.rel (%p302) target = $region40
      $region39: #{mingru_forward_parallel.1} parent=35 // pred_region
        %305 = vst [vmem:[#allocation2] sm:$0x1] 0.0
        %v306 = vld [vmem:[%s281] sm:$0x1]
        %307 = vst [vmem:[#allocation3] sm:$0x1] %v306
        %308 = vst [vmem:[#allocation4] sm:$0x1] 1.0
      $region40: #{mingru_forward_parallel.1} parent=35 // pred_fallthru
        _
      %v309 = vld [vmem:[%s275] sm:$0xff]
      %v310 = vld [vmem:[%s286] sm:$0xff]
      %v311 = vld [vmem:[%s286 + $0x8] sm:$0xff]
      %v312 = vld [vmem:[%s286 + $0x10] sm:$0xff]
      %v313 = vld [vmem:[%s286 + $0x18] sm:$0xff]
      %v314 = vld [vmem:[%s290] sm:$0x3]
      %v316 = vperm.slane %v314, 0
      %v317 = vperm.slane %v314, 1
      %vm320 = vcmask 130048
      %v322 = vsel %vm320, %v309, 0
      %324 = vmatpush.msra.mxu0 0.0
      %325 = vmatpush.msra.mxu0 0.0
      %326 = vmatpush.msra.mxu0 0.0
      %327 = vmatpush.msra.mxu0 0.0
      %328 = vmatpush.msra.mxu0 0.0
      %329 = vmatpush.msra.mxu0 0.0
      %330 = vmatpush.msra.mxu0 0.0
      %331 = vmatpush.msra.mxu0 0.0
      %332 = vmatpush.msra.mxu0 0.0
      %333 = vmatpush.msra.mxu0 0.0
      %334 = vmatpush.msra.mxu0 0.0
      %335 = vmatpush.msra.mxu0 0.0
      %336 = vmatpush.msra.mxu0 0.0
      %337 = vmatpush.msra.mxu0 0.0
      %338 = vmatpush.msra.mxu0 %v312
      %339 = vmatpush.msra.mxu0 %v310
      %340 = vmatmul.f32.gmra.mxu0 %v322
      %v341 = vpop.f32.mrf.mxu0
      %v342 = vadd.f32 %v316, %v341
      %343 = vdwg.mxu0
      %344 = vmatpush.msra.mxu0 0.0
      %345 = vmatpush.msra.mxu0 0.0
      %346 = vmatpush.msra.mxu0 0.0
      %347 = vmatpush.msra.mxu0 0.0
      %348 = vmatpush.msra.mxu0 0.0
      %349 = vmatpush.msra.mxu0 0.0
      %350 = vmatpush.msra.mxu0 0.0
      %351 = vmatpush.msra.mxu0 0.0
      %352 = vmatpush.msra.mxu0 0.0
      %353 = vmatpush.msra.mxu0 0.0
      %354 = vmatpush.msra.mxu0 0.0
      %355 = vmatpush.msra.mxu0 0.0
      %356 = vmatpush.msra.mxu0 0.0
      %357 = vmatpush.msra.mxu0 0.0
      %358 = vmatpush.msra.mxu0 %v313
      %359 = vmatpush.msra.mxu0 %v311
      %360 = vmatmul.f32.gmra.mxu0 %v322
      %v361 = vpop.f32.mrf.mxu0
      %v362 = vadd.f32 %v317, %v361
      %363 = vdwg.mxu0
      %v364 = vmax.f32 %v342, 0.0
      %vm365 = vcmp.ne.f32.partialorder %v342, %v342
      %v366 = vadd.f32 %v342, 0.0
      %v367 = vand.u32 2147483647, %v342
      %v368 = vsub.f32 0.0, %v367
      %v369 = vmul.f32 %v368, 1.442695
      %v370 = vpow.pop %v369
      %v371 = vadd.f32 %v370, 1.0
      %v372 = vlog2.pop %v371
      %v373 = vmul.f32 %v372, 0.6931472
      %v374 = vmul.f32 -0.5, %v370
      %v375 = vadd.f32 %v374, 1.0
      %v376 = vmul.f32 %v375, %v370
      %v377 = vand.u32 2147483647, %v370
      %vm378 = vcmp.lt.f32.partialorder %v377, 0.0004427343
      %v379 = vsel %vm378, %v376, %v373
      %v380 = vadd.f32 %v364, %v379
      %v381 = vsel %vm365, %v366, %v380
      %v382 = vsub.f32 0.0, %v381
      %v383 = vadd.f32 %v342, %v382
      %vm384 = vcmp.ge.f32.partialorder %v362, 0.0
      %v385 = vadd.f32 %v362, 0.5
      %v386 = vxor.u32 %v362, 2147483648
      %v387 = vmul.f32 %v386, 1.442695
      %v388 = vpow.pop %v387
      %v389 = vadd.f32 %v388, 1.0
      %v390 = vrcp.pop %v389
      %v391 = vmul.f32 %v389, %v390
      %v392 = vsub.f32 1.0, %v391
      %v393 = vmul.f32 %v390, %v392
      %v394 = vadd.f32 %v390, %v393
      %vm395 = vweird.f32 %v389
      %vm396 = vweird.f32 %v390
      %vm397 = vmor %vm395, %vm396
      %v398 = vsel %vm397, %v390, %v394
      %v399 = vand.u32 2147483647, %v389
      %vm400 = vcmp.eq.f32.partialorder %v399, 8.507059e+37
      %v401 = vand.u32 %v389, 2147483648
      %v402 = vor.u32 1.1754944e-38, %v401
      %v403 = vsel %vm400, %v402, %v398
      %v404 = vmul.f32 1.0, %v403
      %v405 = vsel %vm384, %v385, %v404
      %v406 = vlog2.pop %v405
      %v407 = vmul.f32 %v406, 0.6931472
      %v408 = vadd.f32 %v383, %v407
      %409 = vst [vmem:[#allocation5] sm:$0xff] %v382
      %410 = vst [vmem:[#allocation6] sm:$0xff] %v408
      %v411 = vlaneseq
      %v412 = vshrl.u32 %v411, 7
      %v413 = vld [vmem:[#allocation2] sm:$0x1]
      %v414 = vld [vmem:[#allocation3] sm:$0x1]
      %v415 = vld [vmem:[#allocation4] sm:$0x1]
      %v416 = vld [vmem:[#allocation5] sm:$0xff]
      %v417 = vld [vmem:[#allocation6] sm:$0xff]
      %v418 = vrot.slane %v416, 7
      %vm419 = vcmp.ge.s32.totalorder %v412, 1
      %v420 = vsel %vm419, %v418, 0.0
      %v421 = vadd.f32 %v416, %v420
      %v422 = vrot.slane %v421, 6
      %vm423 = vcmp.ge.s32.totalorder %v412, 2
      %v424 = vsel %vm423, %v422, 0.0
      %v425 = vadd.f32 %v421, %v424
      %v426 = vrot.slane %v425, 4
      %vm427 = vcmp.ge.s32.totalorder %v412, 4
      %v428 = vsel %vm427, %v426, 0.0
      %v429 = vadd.f32 %v425, %v428
      %v431 = vperm.slane %v413, 0
      %v433 = vadd.f32 %v431, %v429
      %v434 = vsub.f32 %v417, %v433
      %v435 = vrot.slane %v434, 4
      %v436 = vmax.f32 %v434, %v435
      %v437 = vrot.slane %v436, 2
      %v438 = vmax.f32 %v436, %v437
      %v439 = vrot.slane %v438, 1
      %v440 = vmax.f32 %v438, %v439
      %v441 = vmax.f32 %v414, %v440
      %v443 = vperm.slane %v441, 0
      %v445 = vsub.f32 %v434, %v443
      %v446 = vmul.f32 %v445, 1.442695
      %v447 = vpow.pop %v446
      %v448 = vsub.f32 %v414, %v441
      %v449 = vmul.f32 %v448, 1.442695
      %v450 = vpow.pop %v449
      %v451 = vmul.f32 %v415, %v450
      %v452 = vrot.slane %v447, 7
      %v453 = vsel %vm419, %v452, 0.0
      %v454 = vadd.f32 %v447, %v453
      %v455 = vrot.slane %v454, 6
      %v456 = vsel %vm423, %v455, 0.0
      %v457 = vadd.f32 %v454, %v456
      %v458 = vrot.slane %v457, 4
      %v459 = vsel %vm427, %v458, 0.0
      %v460 = vadd.f32 %v457, %v459
      %v462 = vperm.slane %v451, 0
      %v464 = vadd.f32 %v462, %v460
      %v465 = vadd.f32 %v433, %v443
      %v466 = vmin.f32 %v465, 80.0
      %v467 = vmul.f32 %v466, 1.442695
      %v468 = vpow.pop %v467
      %v469 = vmul.f32 %v468, %v464
      %470 = vst [vmem:[%s300] sm:$0xff] %v469
      %471 = vst [vmem:[#allocation2 - $0x7] sm:$0x80] %v433
      %472 = vst [vmem:[#allocation3] sm:$0x1] %v441
      %473 = vst [vmem:[#allocation4 - $0x7] sm:$0x80] %v464
      %p474 = scmp.lt.s32.totalorder %s20, 1
      %s475 = scalar_select %p474, %s20, 1
      %p476 = scmp.lt.s32.totalorder %s22, 0
      %s477 = scalar_select %p476, %s22, 0
      %p478 = scmp.lt.s32.totalorder %s21, 0
      %s479 = scalar_select %p478, %s21, 0
      %s480 = sadd.s32 %s479, %s477
      %s481 = sadd.s32 %s480, %s475
      %s482 = smul.addr %s481, 8
      %s483 = scalar_lea.vmem %s4, %s482
      // Predicated region
      $region41: #{mingru_forward_parallel.1} parent=35 // pred_check
        %p484 = pneg %p164
      $region42: #{mingru_forward_parallel.1} parent=35 // pred_check_branch
        %486 = sbr.rel (%p484) target = $region44
      $region43: #{mingru_forward_parallel.1} parent=35 // pred_region
        _
      $region44: #{mingru_forward_parallel.1} parent=35 // pred_fallthru
        _
    $region36: #{mingru_forward_parallel.1} parent=5 // pred_fallthru
      _
    %p487 = scmp.le.s32.totalorder 2, %s10
    // Predicated region
    $region45: #{mingru_forward_parallel.1} parent=5 // pred_check
      %p488 = pneg %p487
    $region46: #{mingru_forward_parallel.1} parent=5 // pred_check_branch
      %490 = sbr.rel (%p488) target = $region48
    $region47: #{mingru_forward_parallel.1} parent=5 // pred_region
      %s491 = ssub.s32 %s10, 2
      // Predicated region
      $region49: #{mingru_forward_parallel.1} parent=47 // pred_check
        %p492 = pneg %p170
      $region50: #{mingru_forward_parallel.1} parent=47 // pred_check_branch
        %494 = sbr.rel (%p492) target = $region52
      $region51: #{mingru_forward_parallel.1} parent=47 // pred_region
        %p495 = scmp.lt.s32.totalorder %s23, 1
        %s496 = scalar_select %p495, %s23, 1
        %p497 = scmp.lt.s32.totalorder %s25, 0
        %s498 = scalar_select %p497, %s25, 0
        %p499 = scmp.lt.s32.totalorder %s24, 0
        %s500 = scalar_select %p499, %s24, 0
        %s501 = sadd.s32 %s500, %s498
        %s502 = sadd.s32 %s501, %s496
        %s503 = smul.addr %s502, 8
        %s504 = scalar_lea.vmem %s4, %s503
      $region52: #{mingru_forward_parallel.1} parent=47 // pred_fallthru
        _
    $region48: #{mingru_forward_parallel.1} parent=5 // pred_fallthru
      _
  $region6: #{mingru_forward_parallel.1} parent=0 // loop_footer
    %s14 = sadd.s32 1, %s10
  $region7: #{mingru_forward_parallel.1} parent=0 // loop_footer_branch
    %9 = sbr.rel target = $region3
  $region8: #{mingru_forward_parallel.1} parent=0 // loop_exit
    _

</llo_original>
